<compile_context>
chip_gen: v6e
topology: v6e:2x2x1
jax: 0.10.0
libtpu: 0.0.40
codegen_flags: <defaults>
</compile_context>

<pallas_src>
import functools

import jax
import jax.numpy as jnp
from jax import lax
from jax.experimental import pallas as pl
from jax.experimental.pallas import tpu as pltpu


def rnn_kernel(x_ref, win_ref, whh_ref, b_ref, wro_ref, bro_ref, out_ref,
               xp_ref, hs_ref, *, batch, seq):
    """Whole-sequence RNN forward in a single kernel invocation.

    x_ref   : (B*S, I)  flattened batch-first input (row index = b*S + t)
    win_ref : (I, H)    W_ih^T
    whh_ref : (H, H)    W_hh^T
    b_ref   : (1, H)    b_ih + b_hh (folded in the wrapper)
    wro_ref : (H, O)    W_readout^T
    bro_ref : (1, O)
    out_ref : (B*S, O)  sigmoid(readout(h_t)), same row ordering as x
    xp_ref  : (B*S, H)  VMEM scratch: input projection for every row
    hs_ref  : (B*S, H)  VMEM scratch: hidden state for every row
    """
    H = whh_ref.shape[0]

    # (1) One input-projection matmul for ALL (batch, time) rows; the folded
    #     bias broadcast is hoisted out of the recurrence.
    xp_ref[...] = (
        jnp.dot(x_ref[...], win_ref[...], preferred_element_type=jnp.float32)
        + b_ref[...])

    whh = whh_ref[...]

    # (2) Sequential recurrence over time.  Hidden state h_t for the whole
    #     batch is carried as a (B, H) value (vreg-resident).  Rows for time t
    #     live at batch-major indices {b*S + t}; with B=2 the tiny per-step
    #     gather/scatter is negligible and keeps the recurrent matmul batched.
    def step(t, h):
        xp_t = jnp.concatenate(
            [xp_ref[pl.ds(b * seq + t, 1), :] for b in range(batch)], axis=0)
        h_new = jnp.tanh(
            xp_t + jnp.dot(h, whh, preferred_element_type=jnp.float32))
        for b in range(batch):
            hs_ref[pl.ds(b * seq + t, 1), :] = h_new[b:b + 1, :]
        return h_new

    h0 = jnp.zeros((batch, H), jnp.float32)  # nn.RNN hidden=None -> zeros
    lax.fori_loop(0, seq, step, h0, unroll=True)

    # (3) Batched sigmoid readout: one matmul, one EUP pass, one store.
    logits = (jnp.dot(hs_ref[...], wro_ref[...],
                      preferred_element_type=jnp.float32) + bro_ref[...])
    out_ref[...] = jax.nn.sigmoid(logits)


@jax.jit
def rnn_forward(x_bsi, kernel_params):
    """x_bsi: (B, S, I) batch-first input. Returns (B, S, O)."""
    win, whh, b, wro, bro = kernel_params
    B, S, I = x_bsi.shape
    H = whh.shape[0]
    O = wro.shape[1]

    # Free row-major reshape (no transpose, no data movement).
    x2d = x_bsi.reshape(B * S, I).astype(jnp.float32)

    vmem = pl.BlockSpec(memory_space=pltpu.MemorySpace.VMEM)
    out2d = pl.pallas_call(
        functools.partial(rnn_kernel, batch=B, seq=S),
        out_shape=jax.ShapeDtypeStruct((B * S, O), jnp.float32),
        in_specs=[vmem] * 6,
        out_specs=vmem,
        scratch_shapes=[
            pltpu.VMEM((B * S, H), jnp.float32),   # input projections
            pltpu.VMEM((B * S, H), jnp.float32),   # hidden states
        ],
    )(x2d, win, whh, b, wro, bro)

    return out2d.reshape(B, S, O)


def make_params(key, input_size, hidden_size, output_size):
    """Raw PyTorch-layout params, U(-1/sqrt(H), 1/sqrt(H)) like nn.RNN/nn.Linear."""
    k = 1.0 / jnp.sqrt(jnp.float32(hidden_size))
    keys = jax.random.split(key, 6)
    w_ih = jax.random.uniform(keys[0], (hidden_size, input_size), jnp.float32, -k, k)
    w_hh = jax.random.uniform(keys[1], (hidden_size, hidden_size), jnp.float32, -k, k)
    b_ih = jax.random.uniform(keys[2], (hidden_size,), jnp.float32, -k, k)
    b_hh = jax.random.uniform(keys[3], (hidden_size,), jnp.float32, -k, k)
    w_ro = jax.random.uniform(keys[4], (output_size, hidden_size), jnp.float32, -k, k)
    b_ro = jax.random.uniform(keys[5], (output_size,), jnp.float32, -k, k)
    return (w_ih, w_hh, b_ih, b_hh, w_ro, b_ro)


def prepare_params(raw):
    """One-time repack for the kernel: pre-transpose weights, fold b_ih + b_hh."""
    w_ih, w_hh, b_ih, b_hh, w_ro, b_ro = raw
    return (w_ih.T,                          # (I, H)
            w_hh.T,                          # (H, H)
            (b_ih + b_hh).reshape(1, -1),    # (1, H)
            w_ro.T,                          # (H, O)
            b_ro.reshape(1, -1))             # (1, O)


def _reference(x_bsi, raw):
    """Pure-JAX reference of the same forward pass (sanity check)."""
    w_ih, w_hh, b_ih, b_hh, w_ro, b_ro = raw
    B, S, I = x_bsi.shape
    H = w_hh.shape[0]

    def step(h, x_t):
        h_new = jnp.tanh(x_t @ w_ih.T + b_ih + h @ w_hh.T + b_hh)
        y = jax.nn.sigmoid(h_new @ w_ro.T + b_ro)
        return h_new, y

    h0 = jnp.zeros((B, H), jnp.float32)
    _, ys = lax.scan(step, h0, jnp.transpose(x_bsi, (1, 0, 2)))
    return jnp.transpose(ys, (1, 0, 2))


if __name__ == "__main__":
    # Small shapes consistent with the module's forward (batch_first input).
    batch, seq, input_size, hidden_size, output_size = 2, 8, 4, 32, 4

    key = jax.random.PRNGKey(0)
    kx, kp = jax.random.split(key)
    x = jax.random.normal(kx, (batch, seq, input_size), jnp.float32)

    raw = make_params(kp, input_size, hidden_size, output_size)
    kparams = prepare_params(raw)

    out = rnn_forward(x, kparams)
    out = jax.block_until_ready(out)

    ref = _reference(x, raw)
    assert out.shape == (batch, seq, output_size)
    assert jnp.allclose(out, ref, atol=1e-5, rtol=1e-5), "mismatch vs reference"

    # TODO(synk): module keeps self.hidden across forward() calls (and detach());
    # this kernel always starts from h_0 = 0 (module.init semantics).
    print("KERNEL_OK")
</pallas_src>

<mosaic_0001>
module attributes {stable_mosaic.version = 11 : i64} {
  func.func @rnn_kernel(%arg0: memref<16x4xf32, #tpu.memory_space<vmem>>, %arg1: memref<4x32xf32, #tpu.memory_space<vmem>>, %arg2: memref<32x32xf32, #tpu.memory_space<vmem>>, %arg3: memref<1x32xf32, #tpu.memory_space<vmem>>, %arg4: memref<32x4xf32, #tpu.memory_space<vmem>>, %arg5: memref<1x4xf32, #tpu.memory_space<vmem>>, %arg6: memref<16x4xf32, #tpu.memory_space<vmem>>, %arg7: memref<16x32xf32, #tpu.memory_space<vmem>>, %arg8: memref<16x32xf32, #tpu.memory_space<vmem>>) attributes {dimension_semantics = [], scalar_prefetch = 0 : i64, scratch_operands = 2 : i64, tpu.core_type = #tpu.core_type<tc>} {
    %c0 = arith.constant 0 : index
    %c0_0 = arith.constant 0 : index
    %0 = vector.load %arg0[%c0, %c0_0] : memref<16x4xf32, #tpu.memory_space<vmem>>, vector<16x4xf32>
    %c0_1 = arith.constant 0 : index
    %c0_2 = arith.constant 0 : index
    %1 = vector.load %arg1[%c0_1, %c0_2] : memref<4x32xf32, #tpu.memory_space<vmem>>, vector<4x32xf32>
    %cst = arith.constant dense<0.000000e+00> : vector<16x32xf32>
    %2 = tpu.matmul %0, %1, %cst {dimension_numbers = #tpu.dot_dimension_numbers<[1], [0], [0], [1], [0, 0, 1, 1], [], []>} : vector<16x4xf32>, vector<4x32xf32>, vector<16x32xf32> -> vector<16x32xf32>
    %c0_3 = arith.constant 0 : index
    %c0_4 = arith.constant 0 : index
    %3 = vector.load %arg3[%c0_3, %c0_4] : memref<1x32xf32, #tpu.memory_space<vmem>>, vector<1x32xf32>
    %4 = vector.broadcast %3 : vector<1x32xf32> to vector<16x32xf32>
    %5 = arith.addf %2, %4 : vector<16x32xf32>
    %c0_5 = arith.constant 0 : index
    %c0_6 = arith.constant 0 : index
    %6 = vector.load %arg7[%c0_5, %c0_6] : memref<16x32xf32, #tpu.memory_space<vmem>>, vector<16x32xf32>
    tpu.vector_store %arg7[%c0_5, %c0_6], %5 {strides = array<i32>} : memref<16x32xf32, #tpu.memory_space<vmem>>, vector<16x32xf32>,
    %c0_7 = arith.constant 0 : index
    %c0_8 = arith.constant 0 : index
    %7 = vector.load %arg2[%c0_7, %c0_8] : memref<32x32xf32, #tpu.memory_space<vmem>>, vector<32x32xf32>
    %cst_9 = arith.constant 0.000000e+00 : f32
    %8 = vector.broadcast %cst_9 : f32 to vector<2x32xf32>
    %c0_i32 = arith.constant 0 : i32
    %c0_i32_10 = arith.constant 0 : i32
    %9 = arith.addi %c0_i32_10, %c0_i32 : i32
    %10 = arith.index_cast %9 : i32 to index
    %c0_11 = arith.constant 0 : index
    %11 = vector.load %arg7[%10, %c0_11] : memref<16x32xf32, #tpu.memory_space<vmem>>, vector<1x32xf32>
    %c8_i32 = arith.constant 8 : i32
    %12 = arith.addi %c8_i32, %c0_i32 : i32
    %13 = arith.index_cast %12 : i32 to index
    %c0_12 = arith.constant 0 : index
    %14 = vector.load %arg7[%13, %c0_12] : memref<16x32xf32, #tpu.memory_space<vmem>>, vector<1x32xf32>
    %15 = tpu.concatenate %11, %14 in 0 : vector<1x32xf32>, vector<1x32xf32> -> vector<2x32xf32>
    %cst_13 = arith.constant dense<0.000000e+00> : vector<2x32xf32>
    %16 = tpu.matmul %8, %7, %cst_13 {dimension_numbers = #tpu.dot_dimension_numbers<[1], [0], [0], [1], [0, 0, 1, 1], [], []>} : vector<2x32xf32>, vector<32x32xf32>, vector<2x32xf32> -> vector<2x32xf32>
    %17 = arith.addf %15, %16 : vector<2x32xf32>
    %18 = math.tanh %17 : vector<2x32xf32>
    %19 = vector.extract_strided_slice %18 {offsets = [0, 0], sizes = [1, 32], strides = [1, 1]} : vector<2x32xf32> to vector<1x32xf32>
    %c0_i32_14 = arith.constant 0 : i32
    %20 = arith.addi %c0_i32_14, %c0_i32 : i32
    %21 = arith.index_cast %20 : i32 to index
    %c0_15 = arith.constant 0 : index
    %22 = vector.load %arg8[%21, %c0_15] : memref<16x32xf32, #tpu.memory_space<vmem>>, vector<1x32xf32>
    tpu.vector_store %arg8[%21, %c0_15], %19 {strides = array<i32>} : memref<16x32xf32, #tpu.memory_space<vmem>>, vector<1x32xf32>,
    %23 = vector.extract_strided_slice %18 {offsets = [1, 0], sizes = [1, 32], strides = [1, 1]} : vector<2x32xf32> to vector<1x32xf32>
    %c8_i32_16 = arith.constant 8 : i32
    %24 = arith.addi %c8_i32_16, %c0_i32 : i32
    %25 = arith.index_cast %24 : i32 to index
    %c0_17 = arith.constant 0 : index
    %26 = vector.load %arg8[%25, %c0_17] : memref<16x32xf32, #tpu.memory_space<vmem>>, vector<1x32xf32>
    tpu.vector_store %arg8[%25, %c0_17], %23 {strides = array<i32>} : memref<16x32xf32, #tpu.memory_space<vmem>>, vector<1x32xf32>,
    %c1_i32 = arith.constant 1 : i32
    %c0_i32_18 = arith.constant 0 : i32
    %27 = arith.addi %c0_i32_18, %c1_i32 : i32
    %28 = arith.index_cast %27 : i32 to index
    %c0_19 = arith.constant 0 : index
    %29 = vector.load %arg7[%28, %c0_19] : memref<16x32xf32, #tpu.memory_space<vmem>>, vector<1x32xf32>
    %c8_i32_20 = arith.constant 8 : i32
    %30 = arith.addi %c8_i32_20, %c1_i32 : i32
    %31 = arith.index_cast %30 : i32 to index
    %c0_21 = arith.constant 0 : index
    %32 = vector.load %arg7[%31, %c0_21] : memref<16x32xf32, #tpu.memory_space<vmem>>, vector<1x32xf32>
    %33 = tpu.concatenate %29, %32 in 0 : vector<1x32xf32>, vector<1x32xf32> -> vector<2x32xf32>
    %cst_22 = arith.constant dense<0.000000e+00> : vector<2x32xf32>
    %34 = tpu.matmul %18, %7, %cst_22 {dimension_numbers = #tpu.dot_dimension_numbers<[1], [0], [0], [1], [0, 0, 1, 1], [], []>} : vector<2x32xf32>, vector<32x32xf32>, vector<2x32xf32> -> vector<2x32xf32>
    %35 = arith.addf %33, %34 : vector<2x32xf32>
    %36 = math.tanh %35 : vector<2x32xf32>
    %37 = vector.extract_strided_slice %36 {offsets = [0, 0], sizes = [1, 32], strides = [1, 1]} : vector<2x32xf32> to vector<1x32xf32>
    %c0_i32_23 = arith.constant 0 : i32
    %38 = arith.addi %c0_i32_23, %c1_i32 : i32
    %39 = arith.index_cast %38 : i32 to index
    %c0_24 = arith.constant 0 : index
    %40 = vector.load %arg8[%39, %c0_24] : memref<16x32xf32, #tpu.memory_space<vmem>>, vector<1x32xf32>
    tpu.vector_store %arg8[%39, %c0_24], %37 {strides = array<i32>} : memref<16x32xf32, #tpu.memory_space<vmem>>, vector<1x32xf32>,
    %41 = vector.extract_strided_slice %36 {offsets = [1, 0], sizes = [1, 32], strides = [1, 1]} : vector<2x32xf32> to vector<1x32xf32>
    %c8_i32_25 = arith.constant 8 : i32
    %42 = arith.addi %c8_i32_25, %c1_i32 : i32
    %43 = arith.index_cast %42 : i32 to index
    %c0_26 = arith.constant 0 : index
    %44 = vector.load %arg8[%43, %c0_26] : memref<16x32xf32, #tpu.memory_space<vmem>>, vector<1x32xf32>
    tpu.vector_store %arg8[%43, %c0_26], %41 {strides = array<i32>} : memref<16x32xf32, #tpu.memory_space<vmem>>, vector<1x32xf32>,
    %c2_i32 = arith.constant 2 : i32
    %c0_i32_27 = arith.constant 0 : i32
    %45 = arith.addi %c0_i32_27, %c2_i32 : i32
    %46 = arith.index_cast %45 : i32 to index
    %c0_28 = arith.constant 0 : index
    %47 = vector.load %arg7[%46, %c0_28] : memref<16x32xf32, #tpu.memory_space<vmem>>, vector<1x32xf32>
    %c8_i32_29 = arith.constant 8 : i32
    %48 = arith.addi %c8_i32_29, %c2_i32 : i32
    %49 = arith.index_cast %48 : i32 to index
    %c0_30 = arith.constant 0 : index
    %50 = vector.load %arg7[%49, %c0_30] : memref<16x32xf32, #tpu.memory_space<vmem>>, vector<1x32xf32>
    %51 = tpu.concatenate %47, %50 in 0 : vector<1x32xf32>, vector<1x32xf32> -> vector<2x32xf32>
    %cst_31 = arith.constant dense<0.000000e+00> : vector<2x32xf32>
    %52 = tpu.matmul %36, %7, %cst_31 {dimension_numbers = #tpu.dot_dimension_numbers<[1], [0], [0], [1], [0, 0, 1, 1], [], []>} : vector<2x32xf32>, vector<32x32xf32>, vector<2x32xf32> -> vector<2x32xf32>
    %53 = arith.addf %51, %52 : vector<2x32xf32>
    %54 = math.tanh %53 : vector<2x32xf32>
    %55 = vector.extract_strided_slice %54 {offsets = [0, 0], sizes = [1, 32], strides = [1, 1]} : vector<2x32xf32> to vector<1x32xf32>
    %c0_i32_32 = arith.constant 0 : i32
    %56 = arith.addi %c0_i32_32, %c2_i32 : i32
    %57 = arith.index_cast %56 : i32 to index
    %c0_33 = arith.constant 0 : index
    %58 = vector.load %arg8[%57, %c0_33] : memref<16x32xf32, #tpu.memory_space<vmem>>, vector<1x32xf32>
    tpu.vector_store %arg8[%57, %c0_33], %55 {strides = array<i32>} : memref<16x32xf32, #tpu.memory_space<vmem>>, vector<1x32xf32>,
    %59 = vector.extract_strided_slice %54 {offsets = [1, 0], sizes = [1, 32], strides = [1, 1]} : vector<2x32xf32> to vector<1x32xf32>
    %c8_i32_34 = arith.constant 8 : i32
    %60 = arith.addi %c8_i32_34, %c2_i32 : i32
    %61 = arith.index_cast %60 : i32 to index
    %c0_35 = arith.constant 0 : index
    %62 = vector.load %arg8[%61, %c0_35] : memref<16x32xf32, #tpu.memory_space<vmem>>, vector<1x32xf32>
    tpu.vector_store %arg8[%61, %c0_35], %59 {strides = array<i32>} : memref<16x32xf32, #tpu.memory_space<vmem>>, vector<1x32xf32>,
    %c3_i32 = arith.constant 3 : i32
    %c0_i32_36 = arith.constant 0 : i32
    %63 = arith.addi %c0_i32_36, %c3_i32 : i32
    %64 = arith.index_cast %63 : i32 to index
    %c0_37 = arith.constant 0 : index
    %65 = vector.load %arg7[%64, %c0_37] : memref<16x32xf32, #tpu.memory_space<vmem>>, vector<1x32xf32>
    %c8_i32_38 = arith.constant 8 : i32
    %66 = arith.addi %c8_i32_38, %c3_i32 : i32
    %67 = arith.index_cast %66 : i32 to index
    %c0_39 = arith.constant 0 : index
    %68 = vector.load %arg7[%67, %c0_39] : memref<16x32xf32, #tpu.memory_space<vmem>>, vector<1x32xf32>
    %69 = tpu.concatenate %65, %68 in 0 : vector<1x32xf32>, vector<1x32xf32> -> vector<2x32xf32>
    %cst_40 = arith.constant dense<0.000000e+00> : vector<2x32xf32>
    %70 = tpu.matmul %54, %7, %cst_40 {dimension_numbers = #tpu.dot_dimension_numbers<[1], [0], [0], [1], [0, 0, 1, 1], [], []>} : vector<2x32xf32>, vector<32x32xf32>, vector<2x32xf32> -> vector<2x32xf32>
    %71 = arith.addf %69, %70 : vector<2x32xf32>
    %72 = math.tanh %71 : vector<2x32xf32>
    %73 = vector.extract_strided_slice %72 {offsets = [0, 0], sizes = [1, 32], strides = [1, 1]} : vector<2x32xf32> to vector<1x32xf32>
    %c0_i32_41 = arith.constant 0 : i32
    %74 = arith.addi %c0_i32_41, %c3_i32 : i32
    %75 = arith.index_cast %74 : i32 to index
    %c0_42 = arith.constant 0 : index
    %76 = vector.load %arg8[%75, %c0_42] : memref<16x32xf32, #tpu.memory_space<vmem>>, vector<1x32xf32>
    tpu.vector_store %arg8[%75, %c0_42], %73 {strides = array<i32>} : memref<16x32xf32, #tpu.memory_space<vmem>>, vector<1x32xf32>,
    %77 = vector.extract_strided_slice %72 {offsets = [1, 0], sizes = [1, 32], strides = [1, 1]} : vector<2x32xf32> to vector<1x32xf32>
    %c8_i32_43 = arith.constant 8 : i32
    %78 = arith.addi %c8_i32_43, %c3_i32 : i32
    %79 = arith.index_cast %78 : i32 to index
    %c0_44 = arith.constant 0 : index
    %80 = vector.load %arg8[%79, %c0_44] : memref<16x32xf32, #tpu.memory_space<vmem>>, vector<1x32xf32>
    tpu.vector_store %arg8[%79, %c0_44], %77 {strides = array<i32>} : memref<16x32xf32, #tpu.memory_space<vmem>>, vector<1x32xf32>,
    %c4_i32 = arith.constant 4 : i32
    %c0_i32_45 = arith.constant 0 : i32
    %81 = arith.addi %c0_i32_45, %c4_i32 : i32
    %82 = arith.index_cast %81 : i32 to index
    %c0_46 = arith.constant 0 : index
    %83 = vector.load %arg7[%82, %c0_46] : memref<16x32xf32, #tpu.memory_space<vmem>>, vector<1x32xf32>
    %c8_i32_47 = arith.constant 8 : i32
    %84 = arith.addi %c8_i32_47, %c4_i32 : i32
    %85 = arith.index_cast %84 : i32 to index
    %c0_48 = arith.constant 0 : index
    %86 = vector.load %arg7[%85, %c0_48] : memref<16x32xf32, #tpu.memory_space<vmem>>, vector<1x32xf32>
    %87 = tpu.concatenate %83, %86 in 0 : vector<1x32xf32>, vector<1x32xf32> -> vector<2x32xf32>
    %cst_49 = arith.constant dense<0.000000e+00> : vector<2x32xf32>
    %88 = tpu.matmul %72, %7, %cst_49 {dimension_numbers = #tpu.dot_dimension_numbers<[1], [0], [0], [1], [0, 0, 1, 1], [], []>} : vector<2x32xf32>, vector<32x32xf32>, vector<2x32xf32> -> vector<2x32xf32>
    %89 = arith.addf %87, %88 : vector<2x32xf32>
    %90 = math.tanh %89 : vector<2x32xf32>
    %91 = vector.extract_strided_slice %90 {offsets = [0, 0], sizes = [1, 32], strides = [1, 1]} : vector<2x32xf32> to vector<1x32xf32>
    %c0_i32_50 = arith.constant 0 : i32
    %92 = arith.addi %c0_i32_50, %c4_i32 : i32
    %93 = arith.index_cast %92 : i32 to index
    %c0_51 = arith.constant 0 : index
    %94 = vector.load %arg8[%93, %c0_51] : memref<16x32xf32, #tpu.memory_space<vmem>>, vector<1x32xf32>
    tpu.vector_store %arg8[%93, %c0_51], %91 {strides = array<i32>} : memref<16x32xf32, #tpu.memory_space<vmem>>, vector<1x32xf32>,
    %95 = vector.extract_strided_slice %90 {offsets = [1, 0], sizes = [1, 32], strides = [1, 1]} : vector<2x32xf32> to vector<1x32xf32>
    %c8_i32_52 = arith.constant 8 : i32
    %96 = arith.addi %c8_i32_52, %c4_i32 : i32
    %97 = arith.index_cast %96 : i32 to index
    %c0_53 = arith.constant 0 : index
    %98 = vector.load %arg8[%97, %c0_53] : memref<16x32xf32, #tpu.memory_space<vmem>>, vector<1x32xf32>
    tpu.vector_store %arg8[%97, %c0_53], %95 {strides = array<i32>} : memref<16x32xf32, #tpu.memory_space<vmem>>, vector<1x32xf32>,
    %c5_i32 = arith.constant 5 : i32
    %c0_i32_54 = arith.constant 0 : i32
    %99 = arith.addi %c0_i32_54, %c5_i32 : i32
    %100 = arith.index_cast %99 : i32 to index
    %c0_55 = arith.constant 0 : index
    %101 = vector.load %arg7[%100, %c0_55] : memref<16x32xf32, #tpu.memory_space<vmem>>, vector<1x32xf32>
    %c8_i32_56 = arith.constant 8 : i32
    %102 = arith.addi %c8_i32_56, %c5_i32 : i32
    %103 = arith.index_cast %102 : i32 to index
    %c0_57 = arith.constant 0 : index
    %104 = vector.load %arg7[%103, %c0_57] : memref<16x32xf32, #tpu.memory_space<vmem>>, vector<1x32xf32>
    %105 = tpu.concatenate %101, %104 in 0 : vector<1x32xf32>, vector<1x32xf32> -> vector<2x32xf32>
    %cst_58 = arith.constant dense<0.000000e+00> : vector<2x32xf32>
    %106 = tpu.matmul %90, %7, %cst_58 {dimension_numbers = #tpu.dot_dimension_numbers<[1], [0], [0], [1], [0, 0, 1, 1], [], []>} : vector<2x32xf32>, vector<32x32xf32>, vector<2x32xf32> -> vector<2x32xf32>
    %107 = arith.addf %105, %106 : vector<2x32xf32>
    %108 = math.tanh %107 : vector<2x32xf32>
    %109 = vector.extract_strided_slice %108 {offsets = [0, 0], sizes = [1, 32], strides = [1, 1]} : vector<2x32xf32> to vector<1x32xf32>
    %c0_i32_59 = arith.constant 0 : i32
    %110 = arith.addi %c0_i32_59, %c5_i32 : i32
    %111 = arith.index_cast %110 : i32 to index
    %c0_60 = arith.constant 0 : index
    %112 = vector.load %arg8[%111, %c0_60] : memref<16x32xf32, #tpu.memory_space<vmem>>, vector<1x32xf32>
    tpu.vector_store %arg8[%111, %c0_60], %109 {strides = array<i32>} : memref<16x32xf32, #tpu.memory_space<vmem>>, vector<1x32xf32>,
    %113 = vector.extract_strided_slice %108 {offsets = [1, 0], sizes = [1, 32], strides = [1, 1]} : vector<2x32xf32> to vector<1x32xf32>
    %c8_i32_61 = arith.constant 8 : i32
    %114 = arith.addi %c8_i32_61, %c5_i32 : i32
    %115 = arith.index_cast %114 : i32 to index
    %c0_62 = arith.constant 0 : index
    %116 = vector.load %arg8[%115, %c0_62] : memref<16x32xf32, #tpu.memory_space<vmem>>, vector<1x32xf32>
    tpu.vector_store %arg8[%115, %c0_62], %113 {strides = array<i32>} : memref<16x32xf32, #tpu.memory_space<vmem>>, vector<1x32xf32>,
    %c6_i32 = arith.constant 6 : i32
    %c0_i32_63 = arith.constant 0 : i32
    %117 = arith.addi %c0_i32_63, %c6_i32 : i32
    %118 = arith.index_cast %117 : i32 to index
    %c0_64 = arith.constant 0 : index
    %119 = vector.load %arg7[%118, %c0_64] : memref<16x32xf32, #tpu.memory_space<vmem>>, vector<1x32xf32>
    %c8_i32_65 = arith.constant 8 : i32
    %120 = arith.addi %c8_i32_65, %c6_i32 : i32
    %121 = arith.index_cast %120 : i32 to index
    %c0_66 = arith.constant 0 : index
    %122 = vector.load %arg7[%121, %c0_66] : memref<16x32xf32, #tpu.memory_space<vmem>>, vector<1x32xf32>
    %123 = tpu.concatenate %119, %122 in 0 : vector<1x32xf32>, vector<1x32xf32> -> vector<2x32xf32>
    %cst_67 = arith.constant dense<0.000000e+00> : vector<2x32xf32>
    %124 = tpu.matmul %108, %7, %cst_67 {dimension_numbers = #tpu.dot_dimension_numbers<[1], [0], [0], [1], [0, 0, 1, 1], [], []>} : vector<2x32xf32>, vector<32x32xf32>, vector<2x32xf32> -> vector<2x32xf32>
    %125 = arith.addf %123, %124 : vector<2x32xf32>
    %126 = math.tanh %125 : vector<2x32xf32>
    %127 = vector.extract_strided_slice %126 {offsets = [0, 0], sizes = [1, 32], strides = [1, 1]} : vector<2x32xf32> to vector<1x32xf32>
    %c0_i32_68 = arith.constant 0 : i32
    %128 = arith.addi %c0_i32_68, %c6_i32 : i32
    %129 = arith.index_cast %128 : i32 to index
    %c0_69 = arith.constant 0 : index
    %130 = vector.load %arg8[%129, %c0_69] : memref<16x32xf32, #tpu.memory_space<vmem>>, vector<1x32xf32>
    tpu.vector_store %arg8[%129, %c0_69], %127 {strides = array<i32>} : memref<16x32xf32, #tpu.memory_space<vmem>>, vector<1x32xf32>,
    %131 = vector.extract_strided_slice %126 {offsets = [1, 0], sizes = [1, 32], strides = [1, 1]} : vector<2x32xf32> to vector<1x32xf32>
    %c8_i32_70 = arith.constant 8 : i32
    %132 = arith.addi %c8_i32_70, %c6_i32 : i32
    %133 = arith.index_cast %132 : i32 to index
    %c0_71 = arith.constant 0 : index
    %134 = vector.load %arg8[%133, %c0_71] : memref<16x32xf32, #tpu.memory_space<vmem>>, vector<1x32xf32>
    tpu.vector_store %arg8[%133, %c0_71], %131 {strides = array<i32>} : memref<16x32xf32, #tpu.memory_space<vmem>>, vector<1x32xf32>,
    %c7_i32 = arith.constant 7 : i32
    %c0_i32_72 = arith.constant 0 : i32
    %135 = arith.addi %c0_i32_72, %c7_i32 : i32
    %136 = arith.index_cast %135 : i32 to index
    %c0_73 = arith.constant 0 : index
    %137 = vector.load %arg7[%136, %c0_73] : memref<16x32xf32, #tpu.memory_space<vmem>>, vector<1x32xf32>
    %c8_i32_74 = arith.constant 8 : i32
    %138 = arith.addi %c8_i32_74, %c7_i32 : i32
    %139 = arith.index_cast %138 : i32 to index
    %c0_75 = arith.constant 0 : index
    %140 = vector.load %arg7[%139, %c0_75] : memref<16x32xf32, #tpu.memory_space<vmem>>, vector<1x32xf32>
    %141 = tpu.concatenate %137, %140 in 0 : vector<1x32xf32>, vector<1x32xf32> -> vector<2x32xf32>
    %cst_76 = arith.constant dense<0.000000e+00> : vector<2x32xf32>
    %142 = tpu.matmul %126, %7, %cst_76 {dimension_numbers = #tpu.dot_dimension_numbers<[1], [0], [0], [1], [0, 0, 1, 1], [], []>} : vector<2x32xf32>, vector<32x32xf32>, vector<2x32xf32> -> vector<2x32xf32>
    %143 = arith.addf %141, %142 : vector<2x32xf32>
    %144 = math.tanh %143 : vector<2x32xf32>
    %145 = vector.extract_strided_slice %144 {offsets = [0, 0], sizes = [1, 32], strides = [1, 1]} : vector<2x32xf32> to vector<1x32xf32>
    %c0_i32_77 = arith.constant 0 : i32
    %146 = arith.addi %c0_i32_77, %c7_i32 : i32
    %147 = arith.index_cast %146 : i32 to index
    %c0_78 = arith.constant 0 : index
    %148 = vector.load %arg8[%147, %c0_78] : memref<16x32xf32, #tpu.memory_space<vmem>>, vector<1x32xf32>
    tpu.vector_store %arg8[%147, %c0_78], %145 {strides = array<i32>} : memref<16x32xf32, #tpu.memory_space<vmem>>, vector<1x32xf32>,
    %149 = vector.extract_strided_slice %144 {offsets = [1, 0], sizes = [1, 32], strides = [1, 1]} : vector<2x32xf32> to vector<1x32xf32>
    %c8_i32_79 = arith.constant 8 : i32
    %150 = arith.addi %c8_i32_79, %c7_i32 : i32
    %151 = arith.index_cast %150 : i32 to index
    %c0_80 = arith.constant 0 : index
    %152 = vector.load %arg8[%151, %c0_80] : memref<16x32xf32, #tpu.memory_space<vmem>>, vector<1x32xf32>
    tpu.vector_store %arg8[%151, %c0_80], %149 {strides = array<i32>} : memref<16x32xf32, #tpu.memory_space<vmem>>, vector<1x32xf32>,
    %c8_i32_81 = arith.constant 8 : i32
    %c0_82 = arith.constant 0 : index
    %c0_83 = arith.constant 0 : index
    %153 = vector.load %arg8[%c0_82, %c0_83] : memref<16x32xf32, #tpu.memory_space<vmem>>, vector<16x32xf32>
    %c0_84 = arith.constant 0 : index
    %c0_85 = arith.constant 0 : index
    %154 = vector.load %arg4[%c0_84, %c0_85] : memref<32x4xf32, #tpu.memory_space<vmem>>, vector<32x4xf32>
    %cst_86 = arith.constant dense<0.000000e+00> : vector<16x4xf32>
    %155 = tpu.matmul %153, %154, %cst_86 {dimension_numbers = #tpu.dot_dimension_numbers<[1], [0], [0], [1], [0, 0, 1, 1], [], []>} : vector<16x32xf32>, vector<32x4xf32>, vector<16x4xf32> -> vector<16x4xf32>
    %c0_87 = arith.constant 0 : index
    %c0_88 = arith.constant 0 : index
    %156 = vector.load %arg5[%c0_87, %c0_88] : memref<1x4xf32, #tpu.memory_space<vmem>>, vector<1x4xf32>
    %157 = vector.broadcast %156 : vector<1x4xf32> to vector<16x4xf32>
    %158 = arith.addf %155, %157 : vector<16x4xf32>
    %159 = arith.negf %158 : vector<16x4xf32>
    %160 = math.exp %159 : vector<16x4xf32>
    %cst_89 = arith.constant 1.000000e+00 : f32
    %161 = vector.broadcast %cst_89 : f32 to vector<16x4xf32>
    %162 = arith.addf %161, %160 : vector<16x4xf32>
    %163 = arith.divf %161, %162 : vector<16x4xf32>
    %c0_90 = arith.constant 0 : index
    %c0_91 = arith.constant 0 : index
    %164 = vector.load %arg6[%c0_90, %c0_91] : memref<16x4xf32, #tpu.memory_space<vmem>>, vector<16x4xf32>
    tpu.vector_store %arg6[%c0_90, %c0_91], %163 {strides = array<i32>} : memref<16x4xf32, #tpu.memory_space<vmem>>, vector<16x4xf32>,
    return
  }
}

</mosaic_0001>

<llo_original>
// kernel: rnn_forward.1
$region0: #{rnn_forward.1}
  #allocation0 [shape = 'u32[]', space=smem, size = 0x4, offset = 0x4, fixed_abs, tag = 'smem constant byte address 0x4 - core index']
  #allocation1 [shape = 'u32[144,128]{1,0:T(1,128)}', space=vmem, size = 0x12000, scoped, tag = 'internal scratch']
  #allocation2 [shape = 'f32[16,32]{1,0:T(8,128)}', space=vmem, size = 0x2000, scoped, tag = 'scratch operand']
  #allocation3 [shape = 'f32[16,32]{1,0:T(8,128)}', space=vmem, size = 0x2000, scoped, tag = 'scratch operand']
  %s0 = inlined_call_operand.vmem [shape: f32[16,4], index: 0, kind: input, shape index: {}]
  %s1 = inlined_call_operand.vmem [shape: f32[4,32], index: 1, kind: input, shape index: {}]
  %s2 = inlined_call_operand.vmem [shape: f32[32,32], index: 2, kind: input, shape index: {}]
  %s3 = inlined_call_operand.vmem [shape: f32[1,32], index: 3, kind: input, shape index: {}]
  %s4 = inlined_call_operand.vmem [shape: f32[32,4], index: 4, kind: input, shape index: {}]
  %s5 = inlined_call_operand.vmem [shape: f32[1,4], index: 5, kind: input, shape index: {}]
  %s6 = inlined_call_operand.vmem [shape: f32[16,4], index: 6, kind: output, shape index: {}]
  %s7 = sld [smem:[#allocation0]]
  $region34: #{rnn_forward.1} parent=0
    _
  %s9 = ssub.s32 1, %s7
  %s10 = scalar_select 0, %s9, %s7
  // Predicated region
  $region2: #{rnn_forward.1} parent=0 // pred_check
    _
  $region3: #{rnn_forward.1} parent=0 // pred_check_branch
    %12 = sbr.rel (0) target = $region5
  $region4: #{rnn_forward.1} parent=0 // pred_region
    _
  $region5: #{rnn_forward.1} parent=0 // pred_fallthru
    _
  // Predicated region
  $region6: #{rnn_forward.1} parent=0 // pred_check
    _
  $region7: #{rnn_forward.1} parent=0 // pred_check_branch
    %14 = sbr.rel (0) target = $region9
  $region8: #{rnn_forward.1} parent=0 // pred_region
    _
  $region9: #{rnn_forward.1} parent=0 // pred_fallthru
    _
  // Predicated region
  $region10: #{rnn_forward.1} parent=0 // pred_check
    _
  $region11: #{rnn_forward.1} parent=0 // pred_check_branch
    %16 = sbr.rel (0) target = $region13
  $region12: #{rnn_forward.1} parent=0 // pred_region
    _
  $region13: #{rnn_forward.1} parent=0 // pred_fallthru
    _
  // Predicated region
  $region14: #{rnn_forward.1} parent=0 // pred_check
    _
  $region15: #{rnn_forward.1} parent=0 // pred_check_branch
    %18 = sbr.rel (0) target = $region17
  $region16: #{rnn_forward.1} parent=0 // pred_region
    _
  $region17: #{rnn_forward.1} parent=0 // pred_fallthru
    _
  // Predicated region
  $region18: #{rnn_forward.1} parent=0 // pred_check
    _
  $region19: #{rnn_forward.1} parent=0 // pred_check_branch
    %20 = sbr.rel (0) target = $region21
  $region20: #{rnn_forward.1} parent=0 // pred_region
    _
  $region21: #{rnn_forward.1} parent=0 // pred_fallthru
    _
  // Predicated region
  $region22: #{rnn_forward.1} parent=0 // pred_check
    _
  $region23: #{rnn_forward.1} parent=0 // pred_check_branch
    %22 = sbr.rel (0) target = $region25
  $region24: #{rnn_forward.1} parent=0 // pred_region
    _
  $region25: #{rnn_forward.1} parent=0 // pred_fallthru
    _
  %v23 = vld [vmem:[%s0] sm:$0xff]
  %v24 = vld [vmem:[%s0 + $0x8] sm:$0xff]
  %v25 = vld [vmem:[%s1] sm:$0xf]
  %v26 = vld [vmem:[%s3] sm:$0x1]
  %v28 = vlaneseq
  %v29 = vshrl.u32 %v28, 7
  %v30 = vsub.s32 0, %v29
  %v31 = vrot.slane %v26, %v30
  %vm33 = vcmask 31744
  %v35 = vsel %vm33, %v23, 0
  %v38 = vsel %vm33, %v24, 0
  %vm40 = vcmask 1043456
  %v42 = vsel %vm40, %v25, 0
  %44 = vmatprep.subr.mxu0 0.0
  %45 = vmatpush1.msra.mxu0 0.0
  %46 = vmatprep.subr.mxu0 0.0
  %47 = vmatpush1.msra.mxu0 0.0
  %48 = vmatprep.subr.mxu0 0.0
  %49 = vmatpush1.msra.mxu0 0.0
  %50 = vmatprep.subr.mxu0 0.0
  %51 = vmatpush1.msra.mxu0 0.0
  %52 = vmatprep.subr.mxu0 0.0
  %53 = vmatpush1.msra.mxu0 0.0
  %54 = vmatprep.subr.mxu0 0.0
  %55 = vmatpush1.msra.mxu0 0.0
  %56 = vmatprep.subr.mxu0 0.0
  %57 = vmatpush1.msra.mxu0 0.0
  %58 = vmatprep.subr.mxu0 0.0
  %59 = vmatpush1.msra.mxu0 0.0
  %60 = vmatprep.subr.mxu0 0.0
  %61 = vmatpush1.msra.mxu0 0.0
  %62 = vmatprep.subr.mxu0 0.0
  %63 = vmatpush1.msra.mxu0 0.0
  %64 = vmatprep.subr.mxu0 0.0
  %65 = vmatpush1.msra.mxu0 0.0
  %66 = vmatprep.subr.mxu0 0.0
  %67 = vmatpush1.msra.mxu0 0.0
  %68 = vmatprep.subr.mxu0 0.0
  %69 = vmatpush1.msra.mxu0 0.0
  %70 = vmatprep.subr.mxu0 0.0
  %71 = vmatpush1.msra.mxu0 0.0
  %72 = vmatprep.subr.mxu0 0.0
  %73 = vmatpush1.msra.mxu0 0.0
  %74 = vmatprep.subr.mxu0 0.0
  %75 = vmatpush1.msra.mxu0 %v42
  %76 = vmatprep.subr.mxu0 0.0
  %77 = vmatpush2.msra.mxu0 0.0
  %78 = vmatprep.subr.mxu0 0.0
  %79 = vmatpush2.msra.mxu0 0.0
  %80 = vmatprep.subr.mxu0 0.0
  %81 = vmatpush2.msra.mxu0 0.0
  %82 = vmatprep.subr.mxu0 0.0
  %83 = vmatpush2.msra.mxu0 0.0
  %84 = vmatprep.subr.mxu0 0.0
  %85 = vmatpush2.msra.mxu0 0.0
  %86 = vmatprep.subr.mxu0 0.0
  %87 = vmatpush2.msra.mxu0 0.0
  %88 = vmatprep.subr.mxu0 0.0
  %89 = vmatpush2.msra.mxu0 0.0
  %90 = vmatprep.subr.mxu0 0.0
  %91 = vmatpush2.msra.mxu0 0.0
  %92 = vmatprep.subr.mxu0 0.0
  %93 = vmatpush2.msra.mxu0 0.0
  %94 = vmatprep.subr.mxu0 0.0
  %95 = vmatpush2.msra.mxu0 0.0
  %96 = vmatprep.subr.mxu0 0.0
  %97 = vmatpush2.msra.mxu0 0.0
  %98 = vmatprep.subr.mxu0 0.0
  %99 = vmatpush2.msra.mxu0 0.0
  %100 = vmatprep.subr.mxu0 0.0
  %101 = vmatpush2.msra.mxu0 0.0
  %102 = vmatprep.subr.mxu0 0.0
  %103 = vmatpush2.msra.mxu0 0.0
  %104 = vmatprep.subr.mxu0 0.0
  %105 = vmatpush2.msra.mxu0 0.0
  %106 = vmatprep.subr.mxu0 0.0
  %107 = vmatpush2.msra.mxu0 0.0
  %108 = vmatprep.mubr.f32.mxu0 0.0
  %109 = vmatmul.mubr.f32.gmra.mxu0 %v35
  %v110 = vpop.f32.mrf.mxu0
  %v111 = vadd.f32 %v31, %v110
  %v112 = vpop.f32.mrf.mxu0
  %113 = vmatprep.mubr.f32.mxu0 0.0
  %114 = vmatmul.mubr.f32.gmra.mxu0 %v38
  %v115 = vpop.f32.mrf.mxu0
  %v116 = vadd.f32 %v31, %v115
  %v117 = vpop.f32.mrf.mxu0
  %118 = vdwg.mxu0
  %vm119 = vcmask 261120
  %120 = vst.msk [vmem:[#allocation2] sm:$0xff] %vm119, %v111
  %121 = vst.msk [vmem:[#allocation2 + $0x8] sm:$0xff] %vm119, %v116
  %v122 = vld [vmem:[%s2] sm:$0xff]
  %v123 = vld [vmem:[%s2 + $0x8] sm:$0xff]
  %v124 = vld [vmem:[%s2 + $0x10] sm:$0xff]
  %v125 = vld [vmem:[%s2 + $0x18] sm:$0xff]
  %v126 = vld [vmem:[#allocation2] sm:$0x1]
  %v127 = vld [vmem:[#allocation2 + $0x8] sm:$0x1]
  %v129 = vrot.slane %v127, 7
  %vm131 = vcmask 1040384
  %v132 = vsel %vm131, %v126, %v129
  %v134 = vsel %vm119, 0.0, 0
  %136 = vmatprep.subr.mxu0 0.0
  %137 = vmatpush1.msra.mxu0 0.0
  %138 = vmatprep.subr.mxu0 0.0
  %139 = vmatpush1.msra.mxu0 0.0
  %140 = vmatprep.subr.mxu0 0.0
  %141 = vmatpush1.msra.mxu0 0.0
  %142 = vmatprep.subr.mxu0 0.0
  %143 = vmatpush1.msra.mxu0 0.0
  %144 = vmatprep.subr.mxu0 0.0
  %145 = vmatpush1.msra.mxu0 0.0
  %146 = vmatprep.subr.mxu0 0.0
  %147 = vmatpush1.msra.mxu0 0.0
  %148 = vmatprep.subr.mxu0 0.0
  %149 = vmatpush1.msra.mxu0 0.0
  %150 = vmatprep.subr.mxu0 0.0
  %151 = vmatpush1.msra.mxu0 0.0
  %152 = vmatprep.subr.mxu0 0.0
  %153 = vmatpush1.msra.mxu0 0.0
  %154 = vmatprep.subr.mxu0 0.0
  %155 = vmatpush1.msra.mxu0 0.0
  %156 = vmatprep.subr.mxu0 0.0
  %157 = vmatpush1.msra.mxu0 0.0
  %158 = vmatprep.subr.mxu0 0.0
  %159 = vmatpush1.msra.mxu0 0.0
  %160 = vmatprep.subr.mxu0 0.0
  %161 = vmatpush1.msra.mxu0 %v125
  %162 = vmatprep.subr.mxu0 0.0
  %163 = vmatpush1.msra.mxu0 %v124
  %164 = vmatprep.subr.mxu0 0.0
  %165 = vmatpush1.msra.mxu0 %v123
  %166 = vmatprep.subr.mxu0 0.0
  %167 = vmatpush1.msra.mxu0 %v122
  %168 = vmatprep.subr.mxu0 0.0
  %169 = vmatpush2.msra.mxu0 0.0
  %170 = vmatprep.subr.mxu0 0.0
  %171 = vmatpush2.msra.mxu0 0.0
  %172 = vmatprep.subr.mxu0 0.0
  %173 = vmatpush2.msra.mxu0 0.0
  %174 = vmatprep.subr.mxu0 0.0
  %175 = vmatpush2.msra.mxu0 0.0
  %176 = vmatprep.subr.mxu0 0.0
  %177 = vmatpush2.msra.mxu0 0.0
  %178 = vmatprep.subr.mxu0 0.0
  %179 = vmatpush2.msra.mxu0 0.0
  %180 = vmatprep.subr.mxu0 0.0
  %181 = vmatpush2.msra.mxu0 0.0
  %182 = vmatprep.subr.mxu0 0.0
  %183 = vmatpush2.msra.mxu0 0.0
  %184 = vmatprep.subr.mxu0 0.0
  %185 = vmatpush2.msra.mxu0 0.0
  %186 = vmatprep.subr.mxu0 0.0
  %187 = vmatpush2.msra.mxu0 0.0
  %188 = vmatprep.subr.mxu0 0.0
  %189 = vmatpush2.msra.mxu0 0.0
  %190 = vmatprep.subr.mxu0 0.0
  %191 = vmatpush2.msra.mxu0 0.0
  %192 = vmatprep.subr.mxu0 0.0
  %193 = vmatpush2.msra.mxu0 0.0
  %194 = vmatprep.subr.mxu0 0.0
  %195 = vmatpush2.msra.mxu0 0.0
  %196 = vmatprep.subr.mxu0 0.0
  %197 = vmatpush2.msra.mxu0 0.0
  %198 = vmatprep.subr.mxu0 0.0
  %199 = vmatpush2.msra.mxu0 0.0
  %200 = vmatprep.mubr.f32.mxu0 0.0
  %201 = vmatmul.mubr.f32.gmra.mxu0 %v134
  %v202 = vpop.f32.mrf.mxu0
  %v203 = vadd.f32 0.0, %v202
  %v204 = vpop.f32.mrf.mxu0
  %205 = vdwg.mxu0
  %v206 = vadd.f32 %v132, %v203
  %v207 = vtanh.pop %v206
  %vm208 = vcmask 253952
  %209 = vst.msk [vmem:[#allocation3] sm:$0x1] %vm208, %v207
  %vm210 = vcmask 254977
  %211 = vst.msk [vmem:[#allocation3 + $0x7] sm:$0x2] %vm210, %v207
  %v212 = vld [vmem:[#allocation2 + $0x1] sm:$0x1]
  %v213 = vld [vmem:[#allocation2 + $0x9] sm:$0x1]
  %v215 = vrot.slane %v213, 7
  %v217 = vsel %vm131, %v212, %v215
  %v219 = vsel %vm119, %v207, 0
  %221 = vmatprep.subr.mxu0 0.0
  %222 = vmatpush1.msra.mxu0 0.0
  %223 = vmatprep.subr.mxu0 0.0
  %224 = vmatpush1.msra.mxu0 0.0
  %225 = vmatprep.subr.mxu0 0.0
  %226 = vmatpush1.msra.mxu0 0.0
  %227 = vmatprep.subr.mxu0 0.0
  %228 = vmatpush1.msra.mxu0 0.0
  %229 = vmatprep.subr.mxu0 0.0
  %230 = vmatpush1.msra.mxu0 0.0
  %231 = vmatprep.subr.mxu0 0.0
  %232 = vmatpush1.msra.mxu0 0.0
  %233 = vmatprep.subr.mxu0 0.0
  %234 = vmatpush1.msra.mxu0 0.0
  %235 = vmatprep.subr.mxu0 0.0
  %236 = vmatpush1.msra.mxu0 0.0
  %237 = vmatprep.subr.mxu0 0.0
  %238 = vmatpush1.msra.mxu0 0.0
  %239 = vmatprep.subr.mxu0 0.0
  %240 = vmatpush1.msra.mxu0 0.0
  %241 = vmatprep.subr.mxu0 0.0
  %242 = vmatpush1.msra.mxu0 0.0
  %243 = vmatprep.subr.mxu0 0.0
  %244 = vmatpush1.msra.mxu0 0.0
  %245 = vmatprep.subr.mxu0 0.0
  %246 = vmatpush1.msra.mxu0 %v125
  %247 = vmatprep.subr.mxu0 0.0
  %248 = vmatpush1.msra.mxu0 %v124
  %249 = vmatprep.subr.mxu0 0.0
  %250 = vmatpush1.msra.mxu0 %v123
  %251 = vmatprep.subr.mxu0 0.0
  %252 = vmatpush1.msra.mxu0 %v122
  %253 = vmatprep.subr.mxu0 0.0
  %254 = vmatpush2.msra.mxu0 0.0
  %255 = vmatprep.subr.mxu0 0.0
  %256 = vmatpush2.msra.mxu0 0.0
  %257 = vmatprep.subr.mxu0 0.0
  %258 = vmatpush2.msra.mxu0 0.0
  %259 = vmatprep.subr.mxu0 0.0
  %260 = vmatpush2.msra.mxu0 0.0
  %261 = vmatprep.subr.mxu0 0.0
  %262 = vmatpush2.msra.mxu0 0.0
  %263 = vmatprep.subr.mxu0 0.0
  %264 = vmatpush2.msra.mxu0 0.0
  %265 = vmatprep.subr.mxu0 0.0
  %266 = vmatpush2.msra.mxu0 0.0
  %267 = vmatprep.subr.mxu0 0.0
  %268 = vmatpush2.msra.mxu0 0.0
  %269 = vmatprep.subr.mxu0 0.0
  %270 = vmatpush2.msra.mxu0 0.0
  %271 = vmatprep.subr.mxu0 0.0
  %272 = vmatpush2.msra.mxu0 0.0
  %273 = vmatprep.subr.mxu0 0.0
  %274 = vmatpush2.msra.mxu0 0.0
  %275 = vmatprep.subr.mxu0 0.0
  %276 = vmatpush2.msra.mxu0 0.0
  %277 = vmatprep.subr.mxu0 0.0
  %278 = vmatpush2.msra.mxu0 0.0
  %279 = vmatprep.subr.mxu0 0.0
  %280 = vmatpush2.msra.mxu0 0.0
  %281 = vmatprep.subr.mxu0 0.0
  %282 = vmatpush2.msra.mxu0 0.0
  %283 = vmatprep.subr.mxu0 0.0
  %284 = vmatpush2.msra.mxu0 0.0
  %285 = vmatprep.mubr.f32.mxu0 0.0
  %286 = vmatmul.mubr.f32.gmra.mxu0 %v219
  %v287 = vpop.f32.mrf.mxu0
  %v288 = vadd.f32 0.0, %v287
  %v289 = vpop.f32.mrf.mxu0
  %290 = vdwg.mxu0
  %v291 = vadd.f32 %v217, %v288
  %v292 = vtanh.pop %v291
  %293 = vst.msk [vmem:[#allocation3 + $0x1] sm:$0x1] %vm208, %v292
  %294 = vst.msk [vmem:[#allocation3 + $0x8] sm:$0x2] %vm210, %v292
  %v295 = vld [vmem:[#allocation2 + $0x2] sm:$0x1]
  %v296 = vld [vmem:[#allocation2 + $0xa] sm:$0x1]
  %v298 = vrot.slane %v296, 7
  %v300 = vsel %vm131, %v295, %v298
  %v302 = vsel %vm119, %v292, 0
  %304 = vmatprep.subr.mxu0 0.0
  %305 = vmatpush1.msra.mxu0 0.0
  %306 = vmatprep.subr.mxu0 0.0
  %307 = vmatpush1.msra.mxu0 0.0
  %308 = vmatprep.subr.mxu0 0.0
  %309 = vmatpush1.msra.mxu0 0.0
  %310 = vmatprep.subr.mxu0 0.0
  %311 = vmatpush1.msra.mxu0 0.0
  %312 = vmatprep.subr.mxu0 0.0
  %313 = vmatpush1.msra.mxu0 0.0
  %314 = vmatprep.subr.mxu0 0.0
  %315 = vmatpush1.msra.mxu0 0.0
  %316 = vmatprep.subr.mxu0 0.0
  %317 = vmatpush1.msra.mxu0 0.0
  %318 = vmatprep.subr.mxu0 0.0
  %319 = vmatpush1.msra.mxu0 0.0
  %320 = vmatprep.subr.mxu0 0.0
  %321 = vmatpush1.msra.mxu0 0.0
  %322 = vmatprep.subr.mxu0 0.0
  %323 = vmatpush1.msra.mxu0 0.0
  %324 = vmatprep.subr.mxu0 0.0
  %325 = vmatpush1.msra.mxu0 0.0
  %326 = vmatprep.subr.mxu0 0.0
  %327 = vmatpush1.msra.mxu0 0.0
  %328 = vmatprep.subr.mxu0 0.0
  %329 = vmatpush1.msra.mxu0 %v125
  %330 = vmatprep.subr.mxu0 0.0
  %331 = vmatpush1.msra.mxu0 %v124
  %332 = vmatprep.subr.mxu0 0.0
  %333 = vmatpush1.msra.mxu0 %v123
  %334 = vmatprep.subr.mxu0 0.0
  %335 = vmatpush1.msra.mxu0 %v122
  %336 = vmatprep.subr.mxu0 0.0
  %337 = vmatpush2.msra.mxu0 0.0
  %338 = vmatprep.subr.mxu0 0.0
  %339 = vmatpush2.msra.mxu0 0.0
  %340 = vmatprep.subr.mxu0 0.0
  %341 = vmatpush2.msra.mxu0 0.0
  %342 = vmatprep.subr.mxu0 0.0
  %343 = vmatpush2.msra.mxu0 0.0
  %344 = vmatprep.subr.mxu0 0.0
  %345 = vmatpush2.msra.mxu0 0.0
  %346 = vmatprep.subr.mxu0 0.0
  %347 = vmatpush2.msra.mxu0 0.0
  %348 = vmatprep.subr.mxu0 0.0
  %349 = vmatpush2.msra.mxu0 0.0
  %350 = vmatprep.subr.mxu0 0.0
  %351 = vmatpush2.msra.mxu0 0.0
  %352 = vmatprep.subr.mxu0 0.0
  %353 = vmatpush2.msra.mxu0 0.0
  %354 = vmatprep.subr.mxu0 0.0
  %355 = vmatpush2.msra.mxu0 0.0
  %356 = vmatprep.subr.mxu0 0.0
  %357 = vmatpush2.msra.mxu0 0.0
  %358 = vmatprep.subr.mxu0 0.0
  %359 = vmatpush2.msra.mxu0 0.0
  %360 = vmatprep.subr.mxu0 0.0
  %361 = vmatpush2.msra.mxu0 0.0
  %362 = vmatprep.subr.mxu0 0.0
  %363 = vmatpush2.msra.mxu0 0.0
  %364 = vmatprep.subr.mxu0 0.0
  %365 = vmatpush2.msra.mxu0 0.0
  %366 = vmatprep.subr.mxu0 0.0
  %367 = vmatpush2.msra.mxu0 0.0
  %368 = vmatprep.mubr.f32.mxu0 0.0
  %369 = vmatmul.mubr.f32.gmra.mxu0 %v302
  %v370 = vpop.f32.mrf.mxu0
  %v371 = vadd.f32 0.0, %v370
  %v372 = vpop.f32.mrf.mxu0
  %373 = vdwg.mxu0
  %v374 = vadd.f32 %v300, %v371
  %v375 = vtanh.pop %v374
  %376 = vst.msk [vmem:[#allocation3 + $0x2] sm:$0x1] %vm208, %v375
  %377 = vst.msk [vmem:[#allocation3 + $0x9] sm:$0x2] %vm210, %v375
  %v378 = vld [vmem:[#allocation2 + $0x3] sm:$0x1]
  %v379 = vld [vmem:[#allocation2 + $0xb] sm:$0x1]
  %v381 = vrot.slane %v379, 7
  %v383 = vsel %vm131, %v378, %v381
  %v385 = vsel %vm119, %v375, 0
  %387 = vmatprep.subr.mxu0 0.0
  %388 = vmatpush1.msra.mxu0 0.0
  %389 = vmatprep.subr.mxu0 0.0
  %390 = vmatpush1.msra.mxu0 0.0
  %391 = vmatprep.subr.mxu0 0.0
  %392 = vmatpush1.msra.mxu0 0.0
  %393 = vmatprep.subr.mxu0 0.0
  %394 = vmatpush1.msra.mxu0 0.0
  %395 = vmatprep.subr.mxu0 0.0
  %396 = vmatpush1.msra.mxu0 0.0
  %397 = vmatprep.subr.mxu0 0.0
  %398 = vmatpush1.msra.mxu0 0.0
  %399 = vmatprep.subr.mxu0 0.0
  %400 = vmatpush1.msra.mxu0 0.0
  %401 = vmatprep.subr.mxu0 0.0
  %402 = vmatpush1.msra.mxu0 0.0
  %403 = vmatprep.subr.mxu0 0.0
  %404 = vmatpush1.msra.mxu0 0.0
  %405 = vmatprep.subr.mxu0 0.0
  %406 = vmatpush1.msra.mxu0 0.0
  %407 = vmatprep.subr.mxu0 0.0
  %408 = vmatpush1.msra.mxu0 0.0
  %409 = vmatprep.subr.mxu0 0.0
  %410 = vmatpush1.msra.mxu0 0.0
  %411 = vmatprep.subr.mxu0 0.0
  %412 = vmatpush1.msra.mxu0 %v125
  %413 = vmatprep.subr.mxu0 0.0
  %414 = vmatpush1.msra.mxu0 %v124
  %415 = vmatprep.subr.mxu0 0.0
  %416 = vmatpush1.msra.mxu0 %v123
  %417 = vmatprep.subr.mxu0 0.0
  %418 = vmatpush1.msra.mxu0 %v122
  %419 = vmatprep.subr.mxu0 0.0
  %420 = vmatpush2.msra.mxu0 0.0
  %421 = vmatprep.subr.mxu0 0.0
  %422 = vmatpush2.msra.mxu0 0.0
  %423 = vmatprep.subr.mxu0 0.0
  %424 = vmatpush2.msra.mxu0 0.0
  %425 = vmatprep.subr.mxu0 0.0
  %426 = vmatpush2.msra.mxu0 0.0
  %427 = vmatprep.subr.mxu0 0.0
  %428 = vmatpush2.msra.mxu0 0.0
  %429 = vmatprep.subr.mxu0 0.0
  %430 = vmatpush2.msra.mxu0 0.0
  %431 = vmatprep.subr.mxu0 0.0
  %432 = vmatpush2.msra.mxu0 0.0
  %433 = vmatprep.subr.mxu0 0.0
  %434 = vmatpush2.msra.mxu0 0.0
  %435 = vmatprep.subr.mxu0 0.0
  %436 = vmatpush2.msra.mxu0 0.0
  %437 = vmatprep.subr.mxu0 0.0
  %438 = vmatpush2.msra.mxu0 0.0
  %439 = vmatprep.subr.mxu0 0.0
  %440 = vmatpush2.msra.mxu0 0.0
  %441 = vmatprep.subr.mxu0 0.0
  %442 = vmatpush2.msra.mxu0 0.0
  %443 = vmatprep.subr.mxu0 0.0
  %444 = vmatpush2.msra.mxu0 0.0
  %445 = vmatprep.subr.mxu0 0.0
  %446 = vmatpush2.msra.mxu0 0.0
  %447 = vmatprep.subr.mxu0 0.0
  %448 = vmatpush2.msra.mxu0 0.0
  %449 = vmatprep.subr.mxu0 0.0
  %450 = vmatpush2.msra.mxu0 0.0
  %451 = vmatprep.mubr.f32.mxu0 0.0
  %452 = vmatmul.mubr.f32.gmra.mxu0 %v385
  %v453 = vpop.f32.mrf.mxu0
  %v454 = vadd.f32 0.0, %v453
  %v455 = vpop.f32.mrf.mxu0
  %456 = vdwg.mxu0
  %v457 = vadd.f32 %v383, %v454
  %v458 = vtanh.pop %v457
  %459 = vst.msk [vmem:[#allocation3 + $0x3] sm:$0x1] %vm208, %v458
  %460 = vst.msk [vmem:[#allocation3 + $0xa] sm:$0x2] %vm210, %v458
  %v461 = vld [vmem:[#allocation2 + $0x4] sm:$0x1]
  %v462 = vld [vmem:[#allocation2 + $0xc] sm:$0x1]
  %v464 = vrot.slane %v462, 7
  %v466 = vsel %vm131, %v461, %v464
  %v468 = vsel %vm119, %v458, 0
  %470 = vmatprep.subr.mxu0 0.0
  %471 = vmatpush1.msra.mxu0 0.0
  %472 = vmatprep.subr.mxu0 0.0
  %473 = vmatpush1.msra.mxu0 0.0
  %474 = vmatprep.subr.mxu0 0.0
  %475 = vmatpush1.msra.mxu0 0.0
  %476 = vmatprep.subr.mxu0 0.0
  %477 = vmatpush1.msra.mxu0 0.0
  %478 = vmatprep.subr.mxu0 0.0
  %479 = vmatpush1.msra.mxu0 0.0
  %480 = vmatprep.subr.mxu0 0.0
  %481 = vmatpush1.msra.mxu0 0.0
  %482 = vmatprep.subr.mxu0 0.0
  %483 = vmatpush1.msra.mxu0 0.0
  %484 = vmatprep.subr.mxu0 0.0
  %485 = vmatpush1.msra.mxu0 0.0
  %486 = vmatprep.subr.mxu0 0.0
  %487 = vmatpush1.msra.mxu0 0.0
  %488 = vmatprep.subr.mxu0 0.0
  %489 = vmatpush1.msra.mxu0 0.0
  %490 = vmatprep.subr.mxu0 0.0
  %491 = vmatpush1.msra.mxu0 0.0
  %492 = vmatprep.subr.mxu0 0.0
  %493 = vmatpush1.msra.mxu0 0.0
  %494 = vmatprep.subr.mxu0 0.0
  %495 = vmatpush1.msra.mxu0 %v125
  %496 = vmatprep.subr.mxu0 0.0
  %497 = vmatpush1.msra.mxu0 %v124
  %498 = vmatprep.subr.mxu0 0.0
  %499 = vmatpush1.msra.mxu0 %v123
  %500 = vmatprep.subr.mxu0 0.0
  %501 = vmatpush1.msra.mxu0 %v122
  %502 = vmatprep.subr.mxu0 0.0
  %503 = vmatpush2.msra.mxu0 0.0
  %504 = vmatprep.subr.mxu0 0.0
  %505 = vmatpush2.msra.mxu0 0.0
  %506 = vmatprep.subr.mxu0 0.0
  %507 = vmatpush2.msra.mxu0 0.0
  %508 = vmatprep.subr.mxu0 0.0
  %509 = vmatpush2.msra.mxu0 0.0
  %510 = vmatprep.subr.mxu0 0.0
  %511 = vmatpush2.msra.mxu0 0.0
  %512 = vmatprep.subr.mxu0 0.0
  %513 = vmatpush2.msra.mxu0 0.0
  %514 = vmatprep.subr.mxu0 0.0
  %515 = vmatpush2.msra.mxu0 0.0
  %516 = vmatprep.subr.mxu0 0.0
  %517 = vmatpush2.msra.mxu0 0.0
  %518 = vmatprep.subr.mxu0 0.0
  %519 = vmatpush2.msra.mxu0 0.0
  %520 = vmatprep.subr.mxu0 0.0
  %521 = vmatpush2.msra.mxu0 0.0
  %522 = vmatprep.subr.mxu0 0.0
  %523 = vmatpush2.msra.mxu0 0.0
  %524 = vmatprep.subr.mxu0 0.0
  %525 = vmatpush2.msra.mxu0 0.0
  %526 = vmatprep.subr.mxu0 0.0
  %527 = vmatpush2.msra.mxu0 0.0
  %528 = vmatprep.subr.mxu0 0.0
  %529 = vmatpush2.msra.mxu0 0.0
  %530 = vmatprep.subr.mxu0 0.0
  %531 = vmatpush2.msra.mxu0 0.0
  %532 = vmatprep.subr.mxu0 0.0
  %533 = vmatpush2.msra.mxu0 0.0
  %534 = vmatprep.mubr.f32.mxu0 0.0
  %535 = vmatmul.mubr.f32.gmra.mxu0 %v468
  %v536 = vpop.f32.mrf.mxu0
  %v537 = vadd.f32 0.0, %v536
  %v538 = vpop.f32.mrf.mxu0
  %539 = vdwg.mxu0
  %v540 = vadd.f32 %v466, %v537
  %v541 = vtanh.pop %v540
  %542 = vst.msk [vmem:[#allocation3 + $0x4] sm:$0x1] %vm208, %v541
  %543 = vst.msk [vmem:[#allocation3 + $0xb] sm:$0x2] %vm210, %v541
  %v544 = vld [vmem:[#allocation2 + $0x5] sm:$0x1]
  %v545 = vld [vmem:[#allocation2 + $0xd] sm:$0x1]
  %v547 = vrot.slane %v545, 7
  %v549 = vsel %vm131, %v544, %v547
  %v551 = vsel %vm119, %v541, 0
  %553 = vmatprep.subr.mxu0 0.0
  %554 = vmatpush1.msra.mxu0 0.0
  %555 = vmatprep.subr.mxu0 0.0
  %556 = vmatpush1.msra.mxu0 0.0
  %557 = vmatprep.subr.mxu0 0.0
  %558 = vmatpush1.msra.mxu0 0.0
  %559 = vmatprep.subr.mxu0 0.0
  %560 = vmatpush1.msra.mxu0 0.0
  %561 = vmatprep.subr.mxu0 0.0
  %562 = vmatpush1.msra.mxu0 0.0
  %563 = vmatprep.subr.mxu0 0.0
  %564 = vmatpush1.msra.mxu0 0.0
  %565 = vmatprep.subr.mxu0 0.0
  %566 = vmatpush1.msra.mxu0 0.0
  %567 = vmatprep.subr.mxu0 0.0
  %568 = vmatpush1.msra.mxu0 0.0
  %569 = vmatprep.subr.mxu0 0.0
  %570 = vmatpush1.msra.mxu0 0.0
  %571 = vmatprep.subr.mxu0 0.0
  %572 = vmatpush1.msra.mxu0 0.0
  %573 = vmatprep.subr.mxu0 0.0
  %574 = vmatpush1.msra.mxu0 0.0
  %575 = vmatprep.subr.mxu0 0.0
  %576 = vmatpush1.msra.mxu0 0.0
  %577 = vmatprep.subr.mxu0 0.0
  %578 = vmatpush1.msra.mxu0 %v125
  %579 = vmatprep.subr.mxu0 0.0
  %580 = vmatpush1.msra.mxu0 %v124
  %581 = vmatprep.subr.mxu0 0.0
  %582 = vmatpush1.msra.mxu0 %v123
  %583 = vmatprep.subr.mxu0 0.0
  %584 = vmatpush1.msra.mxu0 %v122
  %585 = vmatprep.subr.mxu0 0.0
  %586 = vmatpush2.msra.mxu0 0.0
  %587 = vmatprep.subr.mxu0 0.0
  %588 = vmatpush2.msra.mxu0 0.0
  %589 = vmatprep.subr.mxu0 0.0
  %590 = vmatpush2.msra.mxu0 0.0
  %591 = vmatprep.subr.mxu0 0.0
  %592 = vmatpush2.msra.mxu0 0.0
  %593 = vmatprep.subr.mxu0 0.0
  %594 = vmatpush2.msra.mxu0 0.0
  %595 = vmatprep.subr.mxu0 0.0
  %596 = vmatpush2.msra.mxu0 0.0
  %597 = vmatprep.subr.mxu0 0.0
  %598 = vmatpush2.msra.mxu0 0.0
  %599 = vmatprep.subr.mxu0 0.0
  %600 = vmatpush2.msra.mxu0 0.0
  %601 = vmatprep.subr.mxu0 0.0
  %602 = vmatpush2.msra.mxu0 0.0
  %603 = vmatprep.subr.mxu0 0.0
  %604 = vmatpush2.msra.mxu0 0.0
  %605 = vmatprep.subr.mxu0 0.0
  %606 = vmatpush2.msra.mxu0 0.0
  %607 = vmatprep.subr.mxu0 0.0
  %608 = vmatpush2.msra.mxu0 0.0
  %609 = vmatprep.subr.mxu0 0.0
  %610 = vmatpush2.msra.mxu0 0.0
  %611 = vmatprep.subr.mxu0 0.0
  %612 = vmatpush2.msra.mxu0 0.0
  %613 = vmatprep.subr.mxu0 0.0
  %614 = vmatpush2.msra.mxu0 0.0
  %615 = vmatprep.subr.mxu0 0.0
  %616 = vmatpush2.msra.mxu0 0.0
  %617 = vmatprep.mubr.f32.mxu0 0.0
  %618 = vmatmul.mubr.f32.gmra.mxu0 %v551
  %v619 = vpop.f32.mrf.mxu0
  %v620 = vadd.f32 0.0, %v619
  %v621 = vpop.f32.mrf.mxu0
  %622 = vdwg.mxu0
  %v623 = vadd.f32 %v549, %v620
  %v624 = vtanh.pop %v623
  %625 = vst.msk [vmem:[#allocation3 + $0x5] sm:$0x1] %vm208, %v624
  %626 = vst.msk [vmem:[#allocation3 + $0xc] sm:$0x2] %vm210, %v624
  %v627 = vld [vmem:[#allocation2 + $0x6] sm:$0x1]
  %v628 = vld [vmem:[#allocation2 + $0xe] sm:$0x1]
  %v630 = vrot.slane %v628, 7
  %v632 = vsel %vm131, %v627, %v630
  %v634 = vsel %vm119, %v624, 0
  %636 = vmatprep.subr.mxu0 0.0
  %637 = vmatpush1.msra.mxu0 0.0
  %638 = vmatprep.subr.mxu0 0.0
  %639 = vmatpush1.msra.mxu0 0.0
  %640 = vmatprep.subr.mxu0 0.0
  %641 = vmatpush1.msra.mxu0 0.0
  %642 = vmatprep.subr.mxu0 0.0
  %643 = vmatpush1.msra.mxu0 0.0
  %644 = vmatprep.subr.mxu0 0.0
  %645 = vmatpush1.msra.mxu0 0.0
  %646 = vmatprep.subr.mxu0 0.0
  %647 = vmatpush1.msra.mxu0 0.0
  %648 = vmatprep.subr.mxu0 0.0
  %649 = vmatpush1.msra.mxu0 0.0
  %650 = vmatprep.subr.mxu0 0.0
  %651 = vmatpush1.msra.mxu0 0.0
  %652 = vmatprep.subr.mxu0 0.0
  %653 = vmatpush1.msra.mxu0 0.0
  %654 = vmatprep.subr.mxu0 0.0
  %655 = vmatpush1.msra.mxu0 0.0
  %656 = vmatprep.subr.mxu0 0.0
  %657 = vmatpush1.msra.mxu0 0.0
  %658 = vmatprep.subr.mxu0 0.0
  %659 = vmatpush1.msra.mxu0 0.0
  %660 = vmatprep.subr.mxu0 0.0
  %661 = vmatpush1.msra.mxu0 %v125
  %662 = vmatprep.subr.mxu0 0.0
  %663 = vmatpush1.msra.mxu0 %v124
  %664 = vmatprep.subr.mxu0 0.0
  %665 = vmatpush1.msra.mxu0 %v123
  %666 = vmatprep.subr.mxu0 0.0
  %667 = vmatpush1.msra.mxu0 %v122
  %668 = vmatprep.subr.mxu0 0.0
  %669 = vmatpush2.msra.mxu0 0.0
  %670 = vmatprep.subr.mxu0 0.0
  %671 = vmatpush2.msra.mxu0 0.0
  %672 = vmatprep.subr.mxu0 0.0
  %673 = vmatpush2.msra.mxu0 0.0
  %674 = vmatprep.subr.mxu0 0.0
  %675 = vmatpush2.msra.mxu0 0.0
  %676 = vmatprep.subr.mxu0 0.0
  %677 = vmatpush2.msra.mxu0 0.0
  %678 = vmatprep.subr.mxu0 0.0
  %679 = vmatpush2.msra.mxu0 0.0
  %680 = vmatprep.subr.mxu0 0.0
  %681 = vmatpush2.msra.mxu0 0.0
  %682 = vmatprep.subr.mxu0 0.0
  %683 = vmatpush2.msra.mxu0 0.0
  %684 = vmatprep.subr.mxu0 0.0
  %685 = vmatpush2.msra.mxu0 0.0
  %686 = vmatprep.subr.mxu0 0.0
  %687 = vmatpush2.msra.mxu0 0.0
  %688 = vmatprep.subr.mxu0 0.0
  %689 = vmatpush2.msra.mxu0 0.0
  %690 = vmatprep.subr.mxu0 0.0
  %691 = vmatpush2.msra.mxu0 0.0
  %692 = vmatprep.subr.mxu0 0.0
  %693 = vmatpush2.msra.mxu0 0.0
  %694 = vmatprep.subr.mxu0 0.0
  %695 = vmatpush2.msra.mxu0 0.0
  %696 = vmatprep.subr.mxu0 0.0
  %697 = vmatpush2.msra.mxu0 0.0
  %698 = vmatprep.subr.mxu0 0.0
  %699 = vmatpush2.msra.mxu0 0.0
  %700 = vmatprep.mubr.f32.mxu0 0.0
  %701 = vmatmul.mubr.f32.gmra.mxu0 %v634
  %v702 = vpop.f32.mrf.mxu0
  %v703 = vadd.f32 0.0, %v702
  %v704 = vpop.f32.mrf.mxu0
  %705 = vdwg.mxu0
  %v706 = vadd.f32 %v632, %v703
  %v707 = vtanh.pop %v706
  %708 = vst.msk [vmem:[#allocation3 + $0x6] sm:$0x1] %vm208, %v707
  %709 = vst.msk [vmem:[#allocation3 + $0xd] sm:$0x2] %vm210, %v707
  %v710 = vld [vmem:[#allocation2 + $0x7] sm:$0x1]
  %v711 = vld [vmem:[#allocation2 + $0xf] sm:$0x1]
  %v713 = vrot.slane %v711, 7
  %v715 = vsel %vm131, %v710, %v713
  %v717 = vsel %vm119, %v707, 0
  %719 = vmatprep.subr.mxu0 0.0
  %720 = vmatpush1.msra.mxu0 0.0
  %721 = vmatprep.subr.mxu0 0.0
  %722 = vmatpush1.msra.mxu0 0.0
  %723 = vmatprep.subr.mxu0 0.0
  %724 = vmatpush1.msra.mxu0 0.0
  %725 = vmatprep.subr.mxu0 0.0
  %726 = vmatpush1.msra.mxu0 0.0
  %727 = vmatprep.subr.mxu0 0.0
  %728 = vmatpush1.msra.mxu0 0.0
  %729 = vmatprep.subr.mxu0 0.0
  %730 = vmatpush1.msra.mxu0 0.0
  %731 = vmatprep.subr.mxu0 0.0
  %732 = vmatpush1.msra.mxu0 0.0
  %733 = vmatprep.subr.mxu0 0.0
  %734 = vmatpush1.msra.mxu0 0.0
  %735 = vmatprep.subr.mxu0 0.0
  %736 = vmatpush1.msra.mxu0 0.0
  %737 = vmatprep.subr.mxu0 0.0
  %738 = vmatpush1.msra.mxu0 0.0
  %739 = vmatprep.subr.mxu0 0.0
  %740 = vmatpush1.msra.mxu0 0.0
  %741 = vmatprep.subr.mxu0 0.0
  %742 = vmatpush1.msra.mxu0 0.0
  %743 = vmatprep.subr.mxu0 0.0
  %744 = vmatpush1.msra.mxu0 %v125
  %745 = vmatprep.subr.mxu0 0.0
  %746 = vmatpush1.msra.mxu0 %v124
  %747 = vmatprep.subr.mxu0 0.0
  %748 = vmatpush1.msra.mxu0 %v123
  %749 = vmatprep.subr.mxu0 0.0
  %750 = vmatpush1.msra.mxu0 %v122
  %751 = vmatprep.subr.mxu0 0.0
  %752 = vmatpush2.msra.mxu0 0.0
  %753 = vmatprep.subr.mxu0 0.0
  %754 = vmatpush2.msra.mxu0 0.0
  %755 = vmatprep.subr.mxu0 0.0
  %756 = vmatpush2.msra.mxu0 0.0
  %757 = vmatprep.subr.mxu0 0.0
  %758 = vmatpush2.msra.mxu0 0.0
  %759 = vmatprep.subr.mxu0 0.0
  %760 = vmatpush2.msra.mxu0 0.0
  %761 = vmatprep.subr.mxu0 0.0
  %762 = vmatpush2.msra.mxu0 0.0
  %763 = vmatprep.subr.mxu0 0.0
  %764 = vmatpush2.msra.mxu0 0.0
  %765 = vmatprep.subr.mxu0 0.0
  %766 = vmatpush2.msra.mxu0 0.0
  %767 = vmatprep.subr.mxu0 0.0
  %768 = vmatpush2.msra.mxu0 0.0
  %769 = vmatprep.subr.mxu0 0.0
  %770 = vmatpush2.msra.mxu0 0.0
  %771 = vmatprep.subr.mxu0 0.0
  %772 = vmatpush2.msra.mxu0 0.0
  %773 = vmatprep.subr.mxu0 0.0
  %774 = vmatpush2.msra.mxu0 0.0
  %775 = vmatprep.subr.mxu0 0.0
  %776 = vmatpush2.msra.mxu0 0.0
  %777 = vmatprep.subr.mxu0 0.0
  %778 = vmatpush2.msra.mxu0 0.0
  %779 = vmatprep.subr.mxu0 0.0
  %780 = vmatpush2.msra.mxu0 0.0
  %781 = vmatprep.subr.mxu0 0.0
  %782 = vmatpush2.msra.mxu0 0.0
  %783 = vmatprep.mubr.f32.mxu0 0.0
  %784 = vmatmul.mubr.f32.gmra.mxu0 %v717
  %v785 = vpop.f32.mrf.mxu0
  %v786 = vadd.f32 0.0, %v785
  %v787 = vpop.f32.mrf.mxu0
  %788 = vdwg.mxu0
  %v789 = vadd.f32 %v715, %v786
  %v790 = vtanh.pop %v789
  %791 = vst.msk [vmem:[#allocation3 + $0x7] sm:$0x1] %vm208, %v790
  %792 = vst.msk [vmem:[#allocation3 + $0xe] sm:$0x2] %vm210, %v790
  %v793 = vld [vmem:[#allocation3] sm:$0xff]
  %v794 = vld [vmem:[#allocation3 + $0x8] sm:$0xff]
  %v795 = vld [vmem:[%s4] sm:$0xff]
  %v796 = vld [vmem:[%s4 + $0x8] sm:$0xff]
  %v797 = vld [vmem:[%s4 + $0x10] sm:$0xff]
  %v798 = vld [vmem:[%s4 + $0x18] sm:$0xff]
  %v799 = vld [vmem:[%s5] sm:$0x1]
  %v801 = vlaneseq
  %v802 = vshrl.u32 %v801, 7
  %v803 = vsub.s32 0, %v802
  %v804 = vrot.slane %v799, %v803
  %v807 = vsel %vm119, %v793, 0
  %v810 = vsel %vm119, %v794, 0
  %812 = vmatprep.subr.mxu0 0.0
  %813 = vmatpush1.msra.mxu0 0.0
  %814 = vmatprep.subr.mxu0 0.0
  %815 = vmatpush1.msra.mxu0 0.0
  %816 = vmatprep.subr.mxu0 0.0
  %817 = vmatpush1.msra.mxu0 0.0
  %818 = vmatprep.subr.mxu0 0.0
  %819 = vmatpush1.msra.mxu0 0.0
  %820 = vmatprep.subr.mxu0 0.0
  %821 = vmatpush1.msra.mxu0 0.0
  %822 = vmatprep.subr.mxu0 0.0
  %823 = vmatpush1.msra.mxu0 0.0
  %824 = vmatprep.subr.mxu0 0.0
  %825 = vmatpush1.msra.mxu0 0.0
  %826 = vmatprep.subr.mxu0 0.0
  %827 = vmatpush1.msra.mxu0 0.0
  %828 = vmatprep.subr.mxu0 0.0
  %829 = vmatpush1.msra.mxu0 0.0
  %830 = vmatprep.subr.mxu0 0.0
  %831 = vmatpush1.msra.mxu0 0.0
  %832 = vmatprep.subr.mxu0 0.0
  %833 = vmatpush1.msra.mxu0 0.0
  %834 = vmatprep.subr.mxu0 0.0
  %835 = vmatpush1.msra.mxu0 0.0
  %836 = vmatprep.subr.mxu0 0.0
  %837 = vmatpush1.msra.mxu0 %v798
  %838 = vmatprep.subr.mxu0 0.0
  %839 = vmatpush1.msra.mxu0 %v797
  %840 = vmatprep.subr.mxu0 0.0
  %841 = vmatpush1.msra.mxu0 %v796
  %842 = vmatprep.subr.mxu0 0.0
  %843 = vmatpush1.msra.mxu0 %v795
  %844 = vmatprep.subr.mxu0 0.0
  %845 = vmatpush2.msra.mxu0 0.0
  %846 = vmatprep.subr.mxu0 0.0
  %847 = vmatpush2.msra.mxu0 0.0
  %848 = vmatprep.subr.mxu0 0.0
  %849 = vmatpush2.msra.mxu0 0.0
  %850 = vmatprep.subr.mxu0 0.0
  %851 = vmatpush2.msra.mxu0 0.0
  %852 = vmatprep.subr.mxu0 0.0
  %853 = vmatpush2.msra.mxu0 0.0
  %854 = vmatprep.subr.mxu0 0.0
  %855 = vmatpush2.msra.mxu0 0.0
  %856 = vmatprep.subr.mxu0 0.0
  %857 = vmatpush2.msra.mxu0 0.0
  %858 = vmatprep.subr.mxu0 0.0
  %859 = vmatpush2.msra.mxu0 0.0
  %860 = vmatprep.subr.mxu0 0.0
  %861 = vmatpush2.msra.mxu0 0.0
  %862 = vmatprep.subr.mxu0 0.0
  %863 = vmatpush2.msra.mxu0 0.0
  %864 = vmatprep.subr.mxu0 0.0
  %865 = vmatpush2.msra.mxu0 0.0
  %866 = vmatprep.subr.mxu0 0.0
  %867 = vmatpush2.msra.mxu0 0.0
  %868 = vmatprep.subr.mxu0 0.0
  %869 = vmatpush2.msra.mxu0 0.0
  %870 = vmatprep.subr.mxu0 0.0
  %871 = vmatpush2.msra.mxu0 0.0
  %872 = vmatprep.subr.mxu0 0.0
  %873 = vmatpush2.msra.mxu0 0.0
  %874 = vmatprep.subr.mxu0 0.0
  %875 = vmatpush2.msra.mxu0 0.0
  %876 = vmatprep.mubr.f32.mxu0 0.0
  %877 = vmatmul.mubr.f32.gmra.mxu0 %v807
  %v878 = vpop.f32.mrf.mxu0
  %v879 = vadd.f32 %v804, %v878
  %v880 = vpop.f32.mrf.mxu0
  %881 = vmatprep.mubr.f32.mxu0 0.0
  %882 = vmatmul.mubr.f32.gmra.mxu0 %v810
  %v883 = vpop.f32.mrf.mxu0
  %v884 = vadd.f32 %v804, %v883
  %v885 = vpop.f32.mrf.mxu0
  %886 = vdwg.mxu0
  %v887 = vxor.u32 %v879, 2147483648
  %v888 = vxor.u32 %v884, 2147483648
  %v889 = vmul.f32 %v887, 1.442695
  %v890 = vpow.pop %v889
  %v891 = vmul.f32 %v888, 1.442695
  %v892 = vpow.pop %v891
  %v893 = vadd.f32 %v890, 1.0
  %v894 = vadd.f32 %v892, 1.0
  %v895 = vrcp.pop %v893
  %v896 = vmul.f32 1.0, %v895
  %v897 = vrcp.pop %v894
  %v898 = vmul.f32 1.0, %v897
  %899 = vst.msk [vmem:[%s6] sm:$0xff] %vm33, %v896
  %900 = vst.msk [vmem:[%s6 + $0x8] sm:$0xff] %vm33, %v898
  // Predicated region
  $region26: #{rnn_forward.1} parent=0 // pred_check
    _
  $region27: #{rnn_forward.1} parent=0 // pred_check_branch
    %902 = sbr.rel (0) target = $region29
  $region28: #{rnn_forward.1} parent=0 // pred_region
    _
  $region29: #{rnn_forward.1} parent=0 // pred_fallthru
    _
  // Predicated region
  $region30: #{rnn_forward.1} parent=0 // pred_check
    _
  $region31: #{rnn_forward.1} parent=0 // pred_check_branch
    %904 = sbr.rel (0) target = $region33
  $region32: #{rnn_forward.1} parent=0 // pred_region
    _
  $region33: #{rnn_forward.1} parent=0 // pred_fallthru
    _

</llo_original>
